<compile_context>
chip_gen: v6e
topology: v6e:2x2x1
jax: 0.10.0
libtpu: 0.0.40
codegen_flags: <defaults>
</compile_context>

<pallas_src>
import functools

import jax
import jax.numpy as jnp
from jax import lax
from jax.experimental import pallas as pl
from jax.experimental.pallas import tpu as pltpu

D_TEXT = 768          # mlm_head in_features (fixed by the module definition)
HIDDEN = 768          # model.hidden_dim (itm_head in_features)
VOCAB = 384           # synthetic tokenizer vocab size (multiple of 128)
MASK_TOKEN_ID = 3
SEP_TOKEN_ID = 2

MAX_MLM_ROW_TILE = 256


def _round_up(a, b):
    return -(-a // b) * b


def _tpu_has_bf16_eup():
    """True on v6e / v7x class chips (bf16 EUP path); False otherwise (e.g. v5e)."""
    try:
        kind = jax.devices()[0].device_kind.lower()
    except Exception:
        return False
    return ("v6" in kind) or ("v7" in kind) or ("trillium" in kind)


# --------------------------------------------------------------------------
# Pallas kernel 1: MLM head (Linear 768 -> vocab) fused with cross-entropy.
# Full vocab weight resident in VMEM (bf16, ~0.56 MB); each row tile computes
# the whole (tm, VOCAB) logits block, a plain LSE, masks padded rows, and
# accumulates sum(CE * valid) into a per-core partial-loss block.
# --------------------------------------------------------------------------
def _mlm_ce_kernel(nvalid_ref, x_ref, w_ref, b_ref, tgt_ref, loss_ref, *,
                   tiles_per_split, use_bf16_exp):
    c = pl.program_id(0)          # per-core split (megacore on v7x)
    i = pl.program_id(1)          # row-tile index within the split
    tm = x_ref.shape[0]

    @pl.when(i == 0)
    def _():
        loss_ref[...] = jnp.zeros_like(loss_ref)

    # logits: (tm, VOCAB) = x (tm,768) @ w (VOCAB,768)^T + b
    # x arrives f32 and is cast to bf16 in-kernel (free VPU work next to the MXU).
    logits = lax.dot_general(
        x_ref[...].astype(jnp.bfloat16), w_ref[...],
        dimension_numbers=(((1,), (1,)), ((), ())),
        preferred_element_type=jnp.float32) + b_ref[...]

    # plain LSE over the resident vocab tile; exp in bf16 on chips with a bf16 EUP
    # (values are <= 0 after max subtraction so exp is in (0, 1]), f32 otherwise.
    m = logits.max(axis=-1, keepdims=True)
    z = logits - m
    if use_bf16_exp:
        p = jnp.exp(z.astype(jnp.bfloat16)).astype(jnp.float32)
    else:
        p = jnp.exp(z)
    lse = m + jnp.log(jnp.sum(p, axis=-1, keepdims=True))

    # pick out the target-class logit
    col = lax.broadcasted_iota(jnp.int32, logits.shape, 1)
    t_logit = jnp.sum(jnp.where(col == tgt_ref[...], logits, 0.0),
                      axis=-1, keepdims=True)

    # validity mask from the SMEM-prefetched masked-token count
    row = (c * tiles_per_split + i) * tm + lax.broadcasted_iota(jnp.int32, (tm, 1), 0)
    valid = (row < nvalid_ref[0]).astype(jnp.float32)

    # fused reduction into the per-core partial-loss block (scalar broadcast add)
    loss_ref[...] += jnp.sum((lse - t_logit) * valid)


def mlm_head_ce_sum(x, w_bf16, b_row, targets, n_valid, *, tm, n_split):
    """Sum of cross-entropy over the first `n_valid` rows of x.

    x: (n, 768) f32 gathered masked-token features (n = n_split*k*tm)
    w_bf16: (VOCAB, 768) bf16, b_row: (1, VOCAB) f32, targets: (n,) int ids,
    n_valid: traced scalar count of real (non-padded) rows.
    """
    n, d = x.shape
    v = w_bf16.shape[0]
    ntiles = n // tm
    tiles_per_split = ntiles // n_split

    kernel = functools.partial(_mlm_ce_kernel,
                               tiles_per_split=tiles_per_split,
                               use_bf16_exp=_tpu_has_bf16_eup())
    cost = pl.CostEstimate(
        flops=2 * n * d * v,
        transcendentals=n * v,
        bytes_accessed=n * d * 4 + v * d * 2 + v * 4 + n * 4 + n_split * 8 * 128 * 4)

    partials = pl.pallas_call(
        kernel,
        out_shape=jax.ShapeDtypeStruct((n_split, 8, 128), jnp.float32),
        grid_spec=pltpu.PrefetchScalarGridSpec(
            num_scalar_prefetch=1,
            grid=(n_split, tiles_per_split),
            in_specs=[
                pl.BlockSpec((tm, d), lambda c, i, nv: (c * tiles_per_split + i, 0)),
                pl.BlockSpec((v, d), lambda c, i, nv: (0, 0)),    # resident weight
                pl.BlockSpec((1, v), lambda c, i, nv: (0, 0)),    # resident bias
                pl.BlockSpec((tm, 1), lambda c, i, nv: (c * tiles_per_split + i, 0)),
            ],
            out_specs=pl.BlockSpec((1, 8, 128), lambda c, i, nv: (c, 0, 0)),
        ),
        compiler_params=pltpu.CompilerParams(
            # c axis: independent per-core partials -> parallel (v7x megacore);
            # i axis: reduces into the partial block -> arbitrary.
            dimension_semantics=("parallel", "arbitrary")),
        cost_estimate=cost,
    )(jnp.reshape(n_valid.astype(jnp.int32), (1,)),
      x,                                   # f32; cast to bf16 inside the kernel
      w_bf16,
      b_row,
      targets.reshape(n, 1).astype(jnp.int32))
    return jnp.sum(partials[:, 0, 0])


# --------------------------------------------------------------------------
# Pallas kernel 2: ITM head (Linear hidden -> 1), lane-dense output.
# x stays (m, hidden); the kernel contracts the LAST dims of both operands:
# (8, hidden) x (tn, hidden) -> (8, tn); row 0 of the weight is the real one.
# No wrapper-side transpose, no large zero-pad.
# --------------------------------------------------------------------------
def _itm_head_kernel(w_ref, x_ref, b_ref, o_ref):
    o_ref[...] = lax.dot_general(
        w_ref[...], x_ref[...].astype(jnp.bfloat16),
        dimension_numbers=(((1,), (1,)), ((), ())),
        preferred_element_type=jnp.float32) + b_ref[...]


def itm_head(x, w8_bf16, b11):
    """Linear(hidden, 1): x (m, hidden) f32 -> logits (m,) f32."""
    m, h = x.shape
    tn = _round_up(m, 8) if m <= 128 else 128
    m_pad = _round_up(m, tn)
    if m_pad != m:
        x = jnp.zeros((m_pad, h), x.dtype).at[:m].set(x)
    cost = pl.CostEstimate(
        flops=2 * 8 * m_pad * h,
        transcendentals=0,
        bytes_accessed=m_pad * h * 4 + 8 * h * 2 + 8 * m_pad * 4)
    out = pl.pallas_call(
        _itm_head_kernel,
        out_shape=jax.ShapeDtypeStruct((8, m_pad), jnp.float32),
        grid_spec=pltpu.PrefetchScalarGridSpec(
            num_scalar_prefetch=0,
            grid=(m_pad // tn,),
            in_specs=[
                pl.BlockSpec((8, h), lambda i: (0, 0)),     # resident itm weight (row 0)
                pl.BlockSpec((tn, h), lambda i: (i, 0)),    # features, token-major
                pl.BlockSpec((1, 1), lambda i: (0, 0)),     # bias
            ],
            out_specs=pl.BlockSpec((8, tn), lambda i: (0, i)),   # lane-dense logits
        ),
        compiler_params=pltpu.CompilerParams(dimension_semantics=("parallel",)),
        cost_estimate=cost,
    )(w8_bf16, x, b11)
    return out[0, :m]


# --------------------------------------------------------------------------
# AgentPretrain (JAX wrapper).  The external sub-model (text encoder, fusion,
# OPE, MAM, tokenizer) is NOT defined by the PyTorch module, so it is stubbed
# deterministically with plain-JAX glue.
# --------------------------------------------------------------------------
class AgentPretrainJax:
    def __init__(self, key):
        ks = jax.random.split(key, 6)
        # module-owned parameters (f32 masters)
        self.mlm_w = 0.02 * jax.random.normal(ks[0], (VOCAB, D_TEXT), jnp.float32)
        self.mlm_b = jnp.zeros((VOCAB,), jnp.float32)
        self.itm_w = 0.02 * jax.random.normal(ks[1], (1, HIDDEN), jnp.float32)
        self.itm_b = jnp.zeros((1,), jnp.float32)
        # kernel-ready copies precomputed ONCE (no per-forward cast/pad passes)
        self.mlm_w_bf16 = self.mlm_w.astype(jnp.bfloat16)
        self.mlm_b_row = self.mlm_b.reshape(1, VOCAB).astype(jnp.float32)
        self.itm_w8 = jnp.zeros((8, HIDDEN), jnp.bfloat16).at[0, :].set(
            self.itm_w.reshape(HIDDEN).astype(jnp.bfloat16))
        self.itm_b11 = self.itm_b.reshape(1, 1).astype(jnp.float32)
        # TODO(synk): external `model` (BERT text encoder / fusion / OPE / MAM /
        # tokenizer) is not part of this module; replaced by deterministic stubs.
        self.emb = 0.02 * jax.random.normal(ks[2], (VOCAB, D_TEXT), jnp.float32)
        self.w_text = 0.02 * jax.random.normal(ks[3], (D_TEXT, D_TEXT), jnp.float32)
        self.w_hist = 0.02 * jax.random.normal(ks[4], (D_TEXT, D_TEXT), jnp.float32)
        self.w_mam = 0.02 * jax.random.normal(ks[5], (D_TEXT, HIDDEN), jnp.float32)
        # jitted hot paths; loss stays on device (no .item()-style host sync here)
        self._mlm_jit = jax.jit(self._forward_MLM)
        self._itm_jit = jax.jit(self._forward_ITM)

    # ---- history branch ----
    def forward_history(self, history_features, history_length):
        # TODO(synk): candidate ragged lists + model.forward_OPE are external; we
        # take pre-pooled per-step history features directly.
        n = history_features.shape[1]
        padding_mask = jnp.arange(n)[None, :] >= history_length[:, None]  # True = pad
        return history_features, padding_mask

    # ---- MLM branch ----
    def _forward_MLM(self, text_ids, history_features, history_length):
        history, history_padding_mask = self.forward_history(history_features,
                                                             history_length)
        b, l = text_ids.shape
        attn = (text_ids != 0).astype(jnp.float32)
        # TODO(synk): utils.MLM random 15% masking replaced by a deterministic mask.
        pos = jnp.arange(l)[None, :]
        masked_mask = (attn > 0) & (pos % 3 == 1) & (text_ids != SEP_TOKEN_ID)
        masked_text_ids = jnp.where(masked_mask, MASK_TOKEN_ID, text_ids)

        # TODO(synk): external text encoder + fusion replaced by plain-JAX glue.
        text_feat = self.emb[masked_text_ids] * attn[..., None]
        hist_mask = (~history_padding_mask).astype(jnp.float32)
        pooled = (history * hist_mask[..., None]).sum(1) / jnp.maximum(
            hist_mask.sum(1, keepdims=True), 1.0)
        tokens = jnp.tanh(text_feat @ self.w_text + (pooled @ self.w_hist)[:, None, :])

        # masked-token gather with a STATIC upper bound (mask is pos%3==1 -> jittable)
        flat_tok = tokens.reshape(-1, D_TEXT)
        flat_ids = text_ids.reshape(-1)
        flat_mask = masked_mask.reshape(-1)
        bound = b * sum(1 for p_ in range(l) if p_ % 3 == 1)      # static
        tm = min(MAX_MLM_ROW_TILE, _round_up(bound, 8))
        ntiles = _round_up(bound, tm) // tm
        n_split = 2 if ntiles >= 2 else 1      # per-core partial losses (v7x megacore)
        ntiles = _round_up(ntiles, n_split)
        npad = ntiles * tm
        idx = jnp.nonzero(flat_mask, size=npad, fill_value=0)[0]
        n_masked = flat_mask.sum().astype(jnp.int32)
        # TODO(synk): fold this row gather into the kernel (scalar-prefetched idx +
        # per-row DMA) to drop one HBM pass at production batch sizes.
        loss_sum = mlm_head_ce_sum(flat_tok[idx], self.mlm_w_bf16, self.mlm_b_row,
                                   flat_ids[idx], n_masked, tm=tm, n_split=n_split)
        return loss_sum / jnp.maximum(n_masked.astype(jnp.float32), 1.0)

    # ---- ITM branch ----
    def _forward_ITM(self, text_ids, history_features, history_length):
        history, history_padding_mask = self.forward_history(history_features,
                                                             history_length)
        bsz, n, c = history.shape
        # TODO(synk): path_id-excluding random.sample -> deterministic batch rolls.
        neg_samples = [jnp.roll(history, s, axis=0) for s in (1, 2, 3)]
        neg_masks = [jnp.roll(history_padding_mask, s, axis=0) for s in (1, 2, 3)]
        lengths = n - history_padding_mask.sum(axis=1)
        # TODO(synk): in-sequence random shuffle -> deterministic flip of valid prefix.
        pos = jnp.arange(n)[None, :]
        flip_idx = jnp.where(pos < lengths[:, None], lengths[:, None] - 1 - pos, pos)
        neg2 = jnp.take_along_axis(
            history, jnp.broadcast_to(flip_idx[..., None], (bsz, n, c)), axis=1)
        neg_samples.append(neg2)
        neg_masks.append(history_padding_mask)

        attn = (text_ids != 0).astype(jnp.float32)
        text_feat = self.emb[text_ids] * attn[..., None]
        reps = 1 + len(neg_samples)                                   # 5
        text_feat = jnp.tile(text_feat, (reps, 1, 1))
        tokens = jnp.concatenate([history] + neg_samples, axis=0)     # (5B, N, C)
        padding_mask = jnp.concatenate([history_padding_mask] + neg_masks, axis=0)

        # TODO(synk): external forward_MAM replaced by a plain-JAX stub.
        text_pooled = text_feat.mean(axis=1)
        path_tokens = jnp.tanh(tokens @ self.w_mam + text_pooled[:, None, :])

        last_idx = (padding_mask.shape[1] - padding_mask.sum(axis=1) - 1).astype(jnp.int32)
        m0 = path_tokens.shape[0]
        # TODO(synk): optionally fuse this last-token gather into the ITM kernel via
        # scalar-prefetched last_idx (saves one (5B,768) intermediate at scale).
        final_tokens = jnp.take_along_axis(
            path_tokens, jnp.broadcast_to(last_idx[:, None, None], (m0, 1, HIDDEN)),
            axis=1)[:, 0, :]

        logits = itm_head(final_tokens, self.itm_w8, self.itm_b11)    # Pallas kernel
        logits = logits.reshape(reps, bsz).T                          # (B, 1+negs)
        # cross-entropy with target class 0 (tiny: 5 classes -> plain JAX)
        return (jax.nn.logsumexp(logits, axis=1) - logits[:, 0]).mean()

    def forward(self, dataset_name, batch):
        path_id, text_ids, history_features, history_length = batch
        del path_id
        if dataset_name == 'MLM':
            loss = self._mlm_jit(text_ids, history_features, history_length)
            return loss, {'MLM': loss}   # device scalar kept in log: no host sync here
        elif dataset_name == 'ITM':
            loss = self._itm_jit(text_ids, history_features, history_length)
            return loss, {'ITM': loss}
        else:
            raise RuntimeError('unknown task.')


if __name__ == "__main__":
    key = jax.random.PRNGKey(0)
    k1, k2, k3 = jax.random.split(key, 3)
    B, L, N = 2, 8, 4

    agent = AgentPretrainJax(k1)

    text_ids = jax.random.randint(k2, (B, L), 4, VOCAB).astype(jnp.int32)
    text_ids = text_ids.at[0, L - 1].set(SEP_TOKEN_ID)
    text_ids = text_ids.at[1, L - 3].set(SEP_TOKEN_ID)
    text_ids = text_ids.at[1, L - 2:].set(0)             # padding on sample 1

    history = jax.random.normal(k3, (B, N, D_TEXT), jnp.float32)
    history_length = jnp.array([4, 3], jnp.int32)
    path_id = jnp.arange(B, dtype=jnp.int32)

    batch = (path_id, text_ids, history, history_length)
    mlm_loss, mlm_log = agent.forward('MLM', batch)
    itm_loss, itm_log = agent.forward('ITM', batch)
    jax.block_until_ready((mlm_loss, itm_loss))
    assert bool(jnp.isfinite(mlm_loss)) and bool(jnp.isfinite(itm_loss))
    print("KERNEL_OK")
</pallas_src>

<mosaic_0001>
module attributes {stable_mosaic.version = 11 : i64} {
  func.func private @main(%arg0: i32) attributes {dimension_semantics = [#tpu.dimension_semantics<core_parallel>], iteration_bounds = array<i64: 2>, tpu.core_type = #tpu.core_type<sc_scalar_subcore>, window_params = []} {
    return
  }
}

module attributes {stable_mosaic.version = 11 : i64} {
  func.func private @main(%arg0: i32) attributes {dimension_semantics = [#tpu.dimension_semantics<core_parallel>], iteration_bounds = array<i64: 2>, tpu.core_type = #tpu.core_type<sc_scalar_subcore>, window_params = []} {
    return
  }
}

module attributes {stable_mosaic.version = 11 : i64} {
  func.func @_mlm_ce_kernel(%arg0: i32, %arg1: i32, %arg2: memref<1xi32, #tpu.memory_space<smem>>, %arg3: memref<8x768xf32, #tpu.memory_space<vmem>>, %arg4: memref<384x768xbf16, #tpu.memory_space<vmem>>, %arg5: memref<1x384xf32, #tpu.memory_space<vmem>>, %arg6: memref<8x1xi32, #tpu.memory_space<vmem>>, %arg7: memref<1x8x128xf32, #tpu.memory_space<vmem>>) attributes {dimension_semantics = [#tpu.dimension_semantics<parallel>, #tpu.dimension_semantics<arbitrary>], iteration_bounds = array<i64: 1, 1>, scalar_prefetch = 1 : i64, scratch_operands = 0 : i64, tpu.core_type = #tpu.core_type<tc>, window_params = [{transform_indices = @transform_0, window_bounds = array<i64: 8, 768>}, {pipeline_mode = #tpu.pipeline_mode<synchronous>, transform_indices = @transform_1, window_bounds = array<i64: 384, 768>}, {pipeline_mode = #tpu.pipeline_mode<synchronous>, transform_indices = @transform_2, window_bounds = array<i64: 1, 384>}, {transform_indices = @transform_3, window_bounds = array<i64: 8, 1>}, {transform_indices = @transform_4, window_bounds = array<i64: 1, 8, 128>}]} {
    %c0_i32 = arith.constant 0 : i32
    %0 = arith.cmpi eq, %arg1, %c0_i32 : i32
    %1 = arith.extui %0 : i1 to i32
    %c0_i32_0 = arith.constant 0 : i32
    %2 = arith.cmpi ne, %1, %c0_i32_0 : i32
    scf.if %2 {
      %cst_20 = arith.constant 0.000000e+00 : f32
      %48 = vector.broadcast %cst_20 : f32 to vector<1x8x128xf32>
      %c0_21 = arith.constant 0 : index
      %c0_22 = arith.constant 0 : index
      %c0_23 = arith.constant 0 : index
      %49 = vector.load %arg7[%c0_21, %c0_22, %c0_23] : memref<1x8x128xf32, #tpu.memory_space<vmem>>, vector<1x8x128xf32>
      tpu.vector_store %arg7[%c0_21, %c0_22, %c0_23], %48 {strides = array<i32>} : memref<1x8x128xf32, #tpu.memory_space<vmem>>, vector<1x8x128xf32>,
    } else {
    }
    %c0 = arith.constant 0 : index
    %c0_1 = arith.constant 0 : index
    %3 = vector.load %arg3[%c0, %c0_1] : memref<8x768xf32, #tpu.memory_space<vmem>>, vector<8x768xf32>
    %4 = arith.truncf %3 : vector<8x768xf32> to vector<8x768xbf16>
    %c0_2 = arith.constant 0 : index
    %c0_3 = arith.constant 0 : index
    %5 = vector.load %arg4[%c0_2, %c0_3] : memref<384x768xbf16, #tpu.memory_space<vmem>>, vector<384x768xbf16>
    %cst = arith.constant dense<0.000000e+00> : vector<8x384xf32>
    %6 = tpu.matmul %4, %5, %cst {dimension_numbers = #tpu.dot_dimension_numbers<[1], [1], [0], [0], [0, 0, 1, 0], [], []>} : vector<8x768xbf16>, vector<384x768xbf16>, vector<8x384xf32> -> vector<8x384xf32>
    %c0_4 = arith.constant 0 : index
    %c0_5 = arith.constant 0 : index
    %7 = vector.load %arg5[%c0_4, %c0_5] : memref<1x384xf32, #tpu.memory_space<vmem>>, vector<1x384xf32>
    %8 = vector.broadcast %7 : vector<1x384xf32> to vector<8x384xf32>
    %9 = arith.addf %6, %8 : vector<8x384xf32>
    %cst_6 = arith.constant dense<0xFF800000> : vector<8xf32>
    %10 = vector.multi_reduction <maximumf>, %9, %cst_6 [1] : vector<8x384xf32> to vector<8xf32>
    %11 = vector.shape_cast %10 : vector<8xf32> to vector<8x1xf32>
    %12 = vector.broadcast %11 : vector<8x1xf32> to vector<8x384xf32>
    %13 = arith.subf %9, %12 : vector<8x384xf32>
    %14 = math.exp %13 : vector<8x384xf32>
    %cst_7 = arith.constant dense<0.000000e+00> : vector<8xf32>
    %15 = vector.multi_reduction <add>, %14, %cst_7 [1] : vector<8x384xf32> to vector<8xf32>
    %16 = vector.shape_cast %15 : vector<8xf32> to vector<8x1xf32>
    %17 = math.log %16 : vector<8x1xf32>
    %18 = arith.addf %11, %17 : vector<8x1xf32>
    %19 = tpu.iota {dimensions = array<i32: 1>} : vector<8x384xi32>
    %c0_8 = arith.constant 0 : index
    %c0_9 = arith.constant 0 : index
    %20 = vector.load %arg6[%c0_8, %c0_9] : memref<8x1xi32, #tpu.memory_space<vmem>>, vector<8x1xi32>
    %21 = vector.broadcast %20 : vector<8x1xi32> to vector<8x384xi32>
    %22 = arith.cmpi eq, %19, %21 : vector<8x384xi32>
    %cst_10 = arith.constant 0.000000e+00 : f32
    %23 = vector.broadcast %cst_10 : f32 to vector<8x384xf32>
    %24 = arith.select %22, %9, %23 : vector<8x384xi1>, vector<8x384xf32>
    %cst_11 = arith.constant dense<0.000000e+00> : vector<8xf32>
    %25 = vector.multi_reduction <add>, %24, %cst_11 [1] : vector<8x384xf32> to vector<8xf32>
    %26 = vector.shape_cast %25 : vector<8xf32> to vector<8x1xf32>
    %c1_i32 = arith.constant 1 : i32
    %27 = arith.muli %arg0, %c1_i32 : i32
    %28 = arith.addi %27, %arg1 : i32
    %c8_i32 = arith.constant 8 : i32
    %29 = arith.muli %28, %c8_i32 : i32
    %30 = tpu.iota {dimensions = array<i32: 0>} : vector<8x1xi32>
    %31 = vector.broadcast %29 : i32 to vector<8x1xi32>
    %32 = arith.addi %31, %30 : vector<8x1xi32>
    %c0_12 = arith.constant 0 : index
    %33 = memref.load %arg2[%c0_12] : memref<1xi32, #tpu.memory_space<smem>>
    %34 = vector.broadcast %33 : i32 to vector<8x1xi32>
    %35 = arith.cmpi slt, %32, %34 : vector<8x1xi32>
    %36 = arith.extui %35 : vector<8x1xi1> to vector<8x1xi32>
    %37 = arith.sitofp %36 : vector<8x1xi32> to vector<8x1xf32>
    %c0_13 = arith.constant 0 : index
    %c0_14 = arith.constant 0 : index
    %c0_15 = arith.constant 0 : index
    %38 = vector.load %arg7[%c0_13, %c0_14, %c0_15] : memref<1x8x128xf32, #tpu.memory_space<vmem>>, vector<1x8x128xf32>
    %39 = arith.subf %18, %26 : vector<8x1xf32>
    %40 = arith.mulf %39, %37 : vector<8x1xf32>
    %41 = vector.shape_cast %40 : vector<8x1xf32> to vector<1x8x1xf32>
    %cst_16 = arith.constant dense<0.000000e+00> : vector<1xf32>
    %42 = vector.multi_reduction <add>, %41, %cst_16 [1, 2] : vector<1x8x1xf32> to vector<1xf32>
    %43 = vector.shape_cast %42 : vector<1xf32> to vector<1x1x1xf32>
    %44 = vector.extract %43[0, 0, 0] : f32 from vector<1x1x1xf32>
    %45 = vector.broadcast %44 : f32 to vector<1x8x128xf32>
    %46 = arith.addf %38, %45 : vector<1x8x128xf32>
    %c0_17 = arith.constant 0 : index
    %c0_18 = arith.constant 0 : index
    %c0_19 = arith.constant 0 : index
    %47 = vector.load %arg7[%c0_17, %c0_18, %c0_19] : memref<1x8x128xf32, #tpu.memory_space<vmem>>, vector<1x8x128xf32>
    tpu.vector_store %arg7[%c0_17, %c0_18, %c0_19], %46 {strides = array<i32>} : memref<1x8x128xf32, #tpu.memory_space<vmem>>, vector<1x8x128xf32>,
    return
  }
  func.func @transform_0(%arg0: i32, %arg1: i32, %arg2: memref<1xi32, #tpu.memory_space<smem>>) -> (i32, i32) {
    %c1_i32 = arith.constant 1 : i32
    %0 = arith.muli %arg0, %c1_i32 : i32
    %1 = arith.addi %0, %arg1 : i32
    %c0_i32 = arith.constant 0 : i32
    %c0_i32_0 = arith.constant 0 : i32
    return %1, %c0_i32 : i32, i32
  }
  func.func @transform_1(%arg0: i32, %arg1: i32, %arg2: memref<1xi32, #tpu.memory_space<smem>>) -> (i32, i32) {
    %c0_i32 = arith.constant 0 : i32
    %c0_i32_0 = arith.constant 0 : i32
    %c0_i32_1 = arith.constant 0 : i32
    return %c0_i32, %c0_i32_0 : i32, i32
  }
  func.func @transform_2(%arg0: i32, %arg1: i32, %arg2: memref<1xi32, #tpu.memory_space<smem>>) -> (i32, i32) {
    %c0_i32 = arith.constant 0 : i32
    %c0_i32_0 = arith.constant 0 : i32
    %c0_i32_1 = arith.constant 0 : i32
    return %c0_i32, %c0_i32_0 : i32, i32
  }
  func.func @transform_3(%arg0: i32, %arg1: i32, %arg2: memref<1xi32, #tpu.memory_space<smem>>) -> (i32, i32) {
    %c1_i32 = arith.constant 1 : i32
    %0 = arith.muli %arg0, %c1_i32 : i32
    %1 = arith.addi %0, %arg1 : i32
    %c0_i32 = arith.constant 0 : i32
    %c0_i32_0 = arith.constant 0 : i32
    return %1, %c0_i32 : i32, i32
  }
  func.func @transform_4(%arg0: i32, %arg1: i32, %arg2: memref<1xi32, #tpu.memory_space<smem>>) -> (i32, i32, i32) {
    %c0_i32 = arith.constant 0 : i32
    %c0_i32_0 = arith.constant 0 : i32
    %c0_i32_1 = arith.constant 0 : i32
    return %arg0, %c0_i32, %c0_i32_0 : i32, i32, i32
  }
}

</mosaic_0001>

<llo_original>
// kernel: _forward_MLM.1
$region0: #{_forward_MLM.1}
  #allocation0 [shape = 'u32[]', space=smem, size = 0x4, offset = 0x4, fixed_abs, tag = 'smem constant byte address 0x4 - core index']
  #allocation1 [shape = 'u32[144,128]{1,0:T(1,128)}', space=vmem, size = 0x12000, scoped, tag = 'internal scratch']
  #allocation2 [shape = 's32[1]{0}', space=sflag, size = 0x4, scoped, tag = 'scoped memory for _forward_MLM.1']
  #allocation3 [shape = 's32[1]{0:T(128)S(6)}', space=smem, size = 0x200, scoped, tag = 'prefetched SMEM operand 0']
  %s0 = inlined_call_operand.<no memory space> [shape: s32[1], index: 0, kind: input, shape index: {}]
  %s1 = inlined_call_operand.vmem [shape: f32[8,768], index: 1, kind: input, shape index: {}]
  %s2 = inlined_call_operand.vmem [shape: bf16[384,768], index: 2, kind: input, shape index: {}]
  %s3 = inlined_call_operand.vmem [shape: f32[1,384], index: 3, kind: input, shape index: {}]
  %s4 = inlined_call_operand.vmem [shape: s32[8,1], index: 4, kind: input, shape index: {}]
  %s5 = inlined_call_operand.vmem [shape: f32[1,8,128], index: 5, kind: output, shape index: {}]
  %s6 = sld [smem:[#allocation0]]
  $region30: #{_forward_MLM.1} parent=0
    _
  %s8 = ssub.s32 1, %s6
  %s9 = scalar_select 0, %s8, %s6
  %10 = sst [smem:[#allocation3]] %s0
  // Predicated region
  $region2: #{_forward_MLM.1} parent=0 // pred_check
    _
  $region3: #{_forward_MLM.1} parent=0 // pred_check_branch
    %12 = sbr.rel (0) target = $region5
  $region4: #{_forward_MLM.1} parent=0 // pred_region
    %s13 = sadd.s32 0, 0
    %p14 = scmp.lt.s32.totalorder %s13, 0
    %s15 = scalar_select %p14, %s13, 0
    %s16 = smul.addr %s15, 6
    %s17 = smul.addr %s16, 8
    %s18 = scalar_lea.vmem %s1, %s17
    %s19 = sadd.s32 0, 0
  $region5: #{_forward_MLM.1} parent=0 // pred_fallthru
    _
  // Predicated region
  $region6: #{_forward_MLM.1} parent=0 // pred_check
    _
  $region7: #{_forward_MLM.1} parent=0 // pred_check_branch
    %21 = sbr.rel (0) target = $region9
  $region8: #{_forward_MLM.1} parent=0 // pred_region
    _
  $region9: #{_forward_MLM.1} parent=0 // pred_fallthru
    _
  // Predicated region
  $region10: #{_forward_MLM.1} parent=0 // pred_check
    _
  $region11: #{_forward_MLM.1} parent=0 // pred_check_branch
    %23 = sbr.rel (0) target = $region13
  $region12: #{_forward_MLM.1} parent=0 // pred_region
    _
  $region13: #{_forward_MLM.1} parent=0 // pred_fallthru
    _
  // Predicated region
  $region14: #{_forward_MLM.1} parent=0 // pred_check
    _
  $region15: #{_forward_MLM.1} parent=0 // pred_check_branch
    %25 = sbr.rel (0) target = $region17
  $region16: #{_forward_MLM.1} parent=0 // pred_region
    %s26 = sadd.s32 0, 0
    %p27 = scmp.lt.s32.totalorder %s26, 0
    %s28 = scalar_select %p27, %s26, 0
    %s29 = smul.addr %s28, 8
    %s30 = scalar_lea.vmem %s4, %s29
    %s31 = sadd.s32 0, 0
  $region17: #{_forward_MLM.1} parent=0 // pred_fallthru
    _
  %s32 = sadd.s32 0, 0
  %p33 = scmp.lt.s32.totalorder %s32, 0
  %s34 = scalar_select %p33, %s32, 0
  %s35 = smul.addr %s34, 6
  %s36 = smul.addr %s35, 8
  %s37 = scalar_lea.vmem %s1, %s36
  %s38 = sadd.s32 0, 0
  %p39 = scmp.lt.s32.totalorder %s38, 0
  %s40 = scalar_select %p39, %s38, 0
  %s41 = smul.addr %s40, 8
  %s42 = scalar_lea.vmem %s4, %s41
  %s43 = sadd.s32 0, 0
  %p44 = scmp.lt.s32.totalorder %s43, 0
  %s45 = scalar_select %p44, %s43, 0
  %s46 = smul.addr %s45, 6
  %s47 = smul.addr %s46, 8
  %s48 = scalar_lea.vmem %s1, %s47
  %s49 = sadd.s32 0, 0
  %s50 = sadd.s32 0, 0
  %p51 = scmp.lt.s32.totalorder %s50, 0
  %s52 = scalar_select %p51, %s50, 0
  %s53 = smul.addr %s52, 8
  %s54 = scalar_lea.vmem %s4, %s53
  %s55 = sadd.s32 0, 0
  %p57 = scmp.eq.s32.totalorder 0, 0
  // Predicated region
  $region18: #{_forward_MLM.1} parent=0 // pred_check
    %p58 = pneg %p57
  $region19: #{_forward_MLM.1} parent=0 // pred_check_branch
    %60 = sbr.rel (%p58) target = $region21
  $region20: #{_forward_MLM.1} parent=0 // pred_region
    %61 = vst [vmem:[%s5] sm:$0xff] 0.0
  $region21: #{_forward_MLM.1} parent=0 // pred_fallthru
    _
  %v62 = vld [vmem:[%s48] sm:$0xff]
  %v63 = vld [vmem:[%s48 + $0x8] sm:$0xff]
  %v64 = vld [vmem:[%s48 + $0x10] sm:$0xff]
  %v65 = vld [vmem:[%s48 + $0x18] sm:$0xff]
  %v66 = vld [vmem:[%s48 + $0x20] sm:$0xff]
  %v67 = vld [vmem:[%s48 + $0x28] sm:$0xff]
  %v68 = vpack.c.bf16 %v62, %v62
  %v69 = vpack.c.bf16 %v63, %v63
  %v70 = vpack.c.bf16 %v64, %v64
  %v71 = vpack.c.bf16 %v65, %v65
  %v72 = vpack.c.bf16 %v66, %v66
  %v73 = vpack.c.bf16 %v67, %v67
  %v74 = vld [vmem:[%s2] sm:$0xff]
  %v75 = vld [vmem:[%s2 + $0x8] sm:$0xff]
  %v76 = vld [vmem:[%s2 + $0x10] sm:$0xff]
  %v77 = vld [vmem:[%s2 + $0x18] sm:$0xff]
  %v78 = vld [vmem:[%s2 + $0x20] sm:$0xff]
  %v79 = vld [vmem:[%s2 + $0x28] sm:$0xff]
  %v80 = vld [vmem:[%s2 + $0x30] sm:$0xff]
  %v81 = vld [vmem:[%s2 + $0x38] sm:$0xff]
  %v82 = vld [vmem:[%s2 + $0x40] sm:$0xff]
  %v83 = vld [vmem:[%s2 + $0x48] sm:$0xff]
  %v84 = vld [vmem:[%s2 + $0x50] sm:$0xff]
  %v85 = vld [vmem:[%s2 + $0x58] sm:$0xff]
  %v86 = vld [vmem:[%s2 + $0x60] sm:$0xff]
  %v87 = vld [vmem:[%s2 + $0x68] sm:$0xff]
  %v88 = vld [vmem:[%s2 + $0x70] sm:$0xff]
  %v89 = vld [vmem:[%s2 + $0x78] sm:$0xff]
  %v90 = vld [vmem:[%s2 + $0x80] sm:$0xff]
  %v91 = vld [vmem:[%s2 + $0x88] sm:$0xff]
  %v92 = vld [vmem:[%s2 + $0x90] sm:$0xff]
  %v93 = vld [vmem:[%s2 + $0x98] sm:$0xff]
  %v94 = vld [vmem:[%s2 + $0xa0] sm:$0xff]
  %v95 = vld [vmem:[%s2 + $0xa8] sm:$0xff]
  %v96 = vld [vmem:[%s2 + $0xb0] sm:$0xff]
  %v97 = vld [vmem:[%s2 + $0xb8] sm:$0xff]
  %v98 = vld [vmem:[%s2 + $0xc0] sm:$0xff]
  %v99 = vld [vmem:[%s2 + $0xc8] sm:$0xff]
  %v100 = vld [vmem:[%s2 + $0xd0] sm:$0xff]
  %v101 = vld [vmem:[%s2 + $0xd8] sm:$0xff]
  %v102 = vld [vmem:[%s2 + $0xe0] sm:$0xff]
  %v103 = vld [vmem:[%s2 + $0xe8] sm:$0xff]
  %v104 = vld [vmem:[%s2 + $0xf0] sm:$0xff]
  %v105 = vld [vmem:[%s2 + $0xf8] sm:$0xff]
  %v106 = vld [vmem:[%s2 + $0x100] sm:$0xff]
  %v107 = vld [vmem:[%s2 + $0x108] sm:$0xff]
  %v108 = vld [vmem:[%s2 + $0x110] sm:$0xff]
  %v109 = vld [vmem:[%s2 + $0x118] sm:$0xff]
  %v110 = vld [vmem:[%s2 + $0x120] sm:$0xff]
  %v111 = vld [vmem:[%s2 + $0x128] sm:$0xff]
  %v112 = vld [vmem:[%s2 + $0x130] sm:$0xff]
  %v113 = vld [vmem:[%s2 + $0x138] sm:$0xff]
  %v114 = vld [vmem:[%s2 + $0x140] sm:$0xff]
  %v115 = vld [vmem:[%s2 + $0x148] sm:$0xff]
  %v116 = vld [vmem:[%s2 + $0x150] sm:$0xff]
  %v117 = vld [vmem:[%s2 + $0x158] sm:$0xff]
  %v118 = vld [vmem:[%s2 + $0x160] sm:$0xff]
  %v119 = vld [vmem:[%s2 + $0x168] sm:$0xff]
  %v120 = vld [vmem:[%s2 + $0x170] sm:$0xff]
  %v121 = vld [vmem:[%s2 + $0x178] sm:$0xff]
  %v122 = vld [vmem:[%s2 + $0x180] sm:$0xff]
  %v123 = vld [vmem:[%s2 + $0x188] sm:$0xff]
  %v124 = vld [vmem:[%s2 + $0x190] sm:$0xff]
  %v125 = vld [vmem:[%s2 + $0x198] sm:$0xff]
  %v126 = vld [vmem:[%s2 + $0x1a0] sm:$0xff]
  %v127 = vld [vmem:[%s2 + $0x1a8] sm:$0xff]
  %v128 = vld [vmem:[%s2 + $0x1b0] sm:$0xff]
  %v129 = vld [vmem:[%s2 + $0x1b8] sm:$0xff]
  %v130 = vld [vmem:[%s2 + $0x1c0] sm:$0xff]
  %v131 = vld [vmem:[%s2 + $0x1c8] sm:$0xff]
  %v132 = vld [vmem:[%s2 + $0x1d0] sm:$0xff]
  %v133 = vld [vmem:[%s2 + $0x1d8] sm:$0xff]
  %v134 = vld [vmem:[%s2 + $0x1e0] sm:$0xff]
  %v135 = vld [vmem:[%s2 + $0x1e8] sm:$0xff]
  %v136 = vld [vmem:[%s2 + $0x1f0] sm:$0xff]
  %v137 = vld [vmem:[%s2 + $0x1f8] sm:$0xff]
  %v138 = vld [vmem:[%s2 + $0x200] sm:$0xff]
  %v139 = vld [vmem:[%s2 + $0x208] sm:$0xff]
  %v140 = vld [vmem:[%s2 + $0x210] sm:$0xff]
  %v141 = vld [vmem:[%s2 + $0x218] sm:$0xff]
  %v142 = vld [vmem:[%s2 + $0x220] sm:$0xff]
  %v143 = vld [vmem:[%s2 + $0x228] sm:$0xff]
  %v144 = vld [vmem:[%s2 + $0x230] sm:$0xff]
  %v145 = vld [vmem:[%s2 + $0x238] sm:$0xff]
  %v146 = vld [vmem:[%s2 + $0x240] sm:$0xff]
  %v147 = vld [vmem:[%s2 + $0x248] sm:$0xff]
  %v148 = vld [vmem:[%s2 + $0x250] sm:$0xff]
  %v149 = vld [vmem:[%s2 + $0x258] sm:$0xff]
  %v150 = vld [vmem:[%s2 + $0x260] sm:$0xff]
  %v151 = vld [vmem:[%s2 + $0x268] sm:$0xff]
  %v152 = vld [vmem:[%s2 + $0x270] sm:$0xff]
  %v153 = vld [vmem:[%s2 + $0x278] sm:$0xff]
  %v154 = vld [vmem:[%s2 + $0x280] sm:$0xff]
  %v155 = vld [vmem:[%s2 + $0x288] sm:$0xff]
  %v156 = vld [vmem:[%s2 + $0x290] sm:$0xff]
  %v157 = vld [vmem:[%s2 + $0x298] sm:$0xff]
  %v158 = vld [vmem:[%s2 + $0x2a0] sm:$0xff]
  %v159 = vld [vmem:[%s2 + $0x2a8] sm:$0xff]
  %v160 = vld [vmem:[%s2 + $0x2b0] sm:$0xff]
  %v161 = vld [vmem:[%s2 + $0x2b8] sm:$0xff]
  %v162 = vld [vmem:[%s2 + $0x2c0] sm:$0xff]
  %v163 = vld [vmem:[%s2 + $0x2c8] sm:$0xff]
  %v164 = vld [vmem:[%s2 + $0x2d0] sm:$0xff]
  %v165 = vld [vmem:[%s2 + $0x2d8] sm:$0xff]
  %v166 = vld [vmem:[%s2 + $0x2e0] sm:$0xff]
  %v167 = vld [vmem:[%s2 + $0x2e8] sm:$0xff]
  %v168 = vld [vmem:[%s2 + $0x2f0] sm:$0xff]
  %v169 = vld [vmem:[%s2 + $0x2f8] sm:$0xff]
  %v170 = vld [vmem:[%s2 + $0x300] sm:$0xff]
  %v171 = vld [vmem:[%s2 + $0x308] sm:$0xff]
  %v172 = vld [vmem:[%s2 + $0x310] sm:$0xff]
  %v173 = vld [vmem:[%s2 + $0x318] sm:$0xff]
  %v174 = vld [vmem:[%s2 + $0x320] sm:$0xff]
  %v175 = vld [vmem:[%s2 + $0x328] sm:$0xff]
  %v176 = vld [vmem:[%s2 + $0x330] sm:$0xff]
  %v177 = vld [vmem:[%s2 + $0x338] sm:$0xff]
  %v178 = vld [vmem:[%s2 + $0x340] sm:$0xff]
  %v179 = vld [vmem:[%s2 + $0x348] sm:$0xff]
  %v180 = vld [vmem:[%s2 + $0x350] sm:$0xff]
  %v181 = vld [vmem:[%s2 + $0x358] sm:$0xff]
  %v182 = vld [vmem:[%s2 + $0x360] sm:$0xff]
  %v183 = vld [vmem:[%s2 + $0x368] sm:$0xff]
  %v184 = vld [vmem:[%s2 + $0x370] sm:$0xff]
  %v185 = vld [vmem:[%s2 + $0x378] sm:$0xff]
  %v186 = vld [vmem:[%s2 + $0x380] sm:$0xff]
  %v187 = vld [vmem:[%s2 + $0x388] sm:$0xff]
  %v188 = vld [vmem:[%s2 + $0x390] sm:$0xff]
  %v189 = vld [vmem:[%s2 + $0x398] sm:$0xff]
  %v190 = vld [vmem:[%s2 + $0x3a0] sm:$0xff]
  %v191 = vld [vmem:[%s2 + $0x3a8] sm:$0xff]
  %v192 = vld [vmem:[%s2 + $0x3b0] sm:$0xff]
  %v193 = vld [vmem:[%s2 + $0x3b8] sm:$0xff]
  %v194 = vld [vmem:[%s2 + $0x3c0] sm:$0xff]
  %v195 = vld [vmem:[%s2 + $0x3c8] sm:$0xff]
  %v196 = vld [vmem:[%s2 + $0x3d0] sm:$0xff]
  %v197 = vld [vmem:[%s2 + $0x3d8] sm:$0xff]
  %v198 = vld [vmem:[%s2 + $0x3e0] sm:$0xff]
  %v199 = vld [vmem:[%s2 + $0x3e8] sm:$0xff]
  %v200 = vld [vmem:[%s2 + $0x3f0] sm:$0xff]
  %v201 = vld [vmem:[%s2 + $0x3f8] sm:$0xff]
  %v202 = vld [vmem:[%s2 + $0x400] sm:$0xff]
  %v203 = vld [vmem:[%s2 + $0x408] sm:$0xff]
  %v204 = vld [vmem:[%s2 + $0x410] sm:$0xff]
  %v205 = vld [vmem:[%s2 + $0x418] sm:$0xff]
  %v206 = vld [vmem:[%s2 + $0x420] sm:$0xff]
  %v207 = vld [vmem:[%s2 + $0x428] sm:$0xff]
  %v208 = vld [vmem:[%s2 + $0x430] sm:$0xff]
  %v209 = vld [vmem:[%s2 + $0x438] sm:$0xff]
  %v210 = vld [vmem:[%s2 + $0x440] sm:$0xff]
  %v211 = vld [vmem:[%s2 + $0x448] sm:$0xff]
  %v212 = vld [vmem:[%s2 + $0x450] sm:$0xff]
  %v213 = vld [vmem:[%s2 + $0x458] sm:$0xff]
  %v214 = vld [vmem:[%s2 + $0x460] sm:$0xff]
  %v215 = vld [vmem:[%s2 + $0x468] sm:$0xff]
  %v216 = vld [vmem:[%s2 + $0x470] sm:$0xff]
  %v217 = vld [vmem:[%s2 + $0x478] sm:$0xff]
  %v218 = vld [vmem:[%s3] sm:$0x7]
  %v220 = vlaneseq
  %v221 = vshrl.u32 %v220, 7
  %v222 = vsub.s32 0, %v221
  %v223 = vrot.slane %v218, %v222
  %v224 = vlaneseq
  %v225 = vshrl.u32 %v224, 7
  %v226 = vsub.s32 1, %v225
  %v227 = vrot.slane %v218, %v226
  %v228 = vlaneseq
  %v229 = vshrl.u32 %v228, 7
  %v230 = vsub.s32 2, %v229
  %v231 = vrot.slane %v218, %v230
  %v379 = vunpack.c.l.b16 %v74
  %v380 = vunpack.c.h.b16 %v74
  %v381 = vunpack.c.l.b16 %v75
  %v382 = vunpack.c.h.b16 %v75
  %v383 = vunpack.c.l.b16 %v76
  %v384 = vunpack.c.h.b16 %v76
  %v385 = vunpack.c.l.b16 %v77
  %v386 = vunpack.c.h.b16 %v77
  %v387 = vunpack.c.l.b16 %v78
  %v388 = vunpack.c.h.b16 %v78
  %v389 = vunpack.c.l.b16 %v79
  %v390 = vunpack.c.h.b16 %v79
  %v391 = vunpack.c.l.b16 %v80
  %v392 = vunpack.c.h.b16 %v80
  %v393 = vunpack.c.l.b16 %v81
  %v394 = vunpack.c.h.b16 %v81
  %v395 = vunpack.c.l.b16 %v82
  %v396 = vunpack.c.h.b16 %v82
  %v397 = vunpack.c.l.b16 %v83
  %v398 = vunpack.c.h.b16 %v83
  %v399 = vunpack.c.l.b16 %v84
  %v400 = vunpack.c.h.b16 %v84
  %v401 = vunpack.c.l.b16 %v85
  %v402 = vunpack.c.h.b16 %v85
  %v403 = vunpack.c.l.b16 %v86
  %v404 = vunpack.c.h.b16 %v86
  %v405 = vunpack.c.l.b16 %v87
  %v406 = vunpack.c.h.b16 %v87
  %v407 = vunpack.c.l.b16 %v88
  %v408 = vunpack.c.h.b16 %v88
  %v409 = vunpack.c.l.b16 %v89
  %v410 = vunpack.c.h.b16 %v89
  %v411 = vunpack.c.l.b16 %v90
  %v412 = vunpack.c.h.b16 %v90
  %v413 = vunpack.c.l.b16 %v91
  %v414 = vunpack.c.h.b16 %v91
  %v415 = vunpack.c.l.b16 %v92
  %v416 = vunpack.c.h.b16 %v92
  %v417 = vunpack.c.l.b16 %v93
  %v418 = vunpack.c.h.b16 %v93
  %v419 = vunpack.c.l.b16 %v94
  %v420 = vunpack.c.h.b16 %v94
  %v421 = vunpack.c.l.b16 %v95
  %v422 = vunpack.c.h.b16 %v95
  %v423 = vunpack.c.l.b16 %v96
  %v424 = vunpack.c.h.b16 %v96
  %v425 = vunpack.c.l.b16 %v97
  %v426 = vunpack.c.h.b16 %v97
  %v427 = vunpack.c.l.b16 %v98
  %v428 = vunpack.c.h.b16 %v98
  %v429 = vunpack.c.l.b16 %v99
  %v430 = vunpack.c.h.b16 %v99
  %v431 = vunpack.c.l.b16 %v100
  %v432 = vunpack.c.h.b16 %v100
  %v433 = vunpack.c.l.b16 %v101
  %v434 = vunpack.c.h.b16 %v101
  %v435 = vunpack.c.l.b16 %v102
  %v436 = vunpack.c.h.b16 %v102
  %v437 = vunpack.c.l.b16 %v103
  %v438 = vunpack.c.h.b16 %v103
  %v439 = vunpack.c.l.b16 %v104
  %v440 = vunpack.c.h.b16 %v104
  %v441 = vunpack.c.l.b16 %v105
  %v442 = vunpack.c.h.b16 %v105
  %v443 = vunpack.c.l.b16 %v106
  %v444 = vunpack.c.h.b16 %v106
  %v445 = vunpack.c.l.b16 %v107
  %v446 = vunpack.c.h.b16 %v107
  %v447 = vunpack.c.l.b16 %v108
  %v448 = vunpack.c.h.b16 %v108
  %v449 = vunpack.c.l.b16 %v109
  %v450 = vunpack.c.h.b16 %v109
  %v451 = vunpack.c.l.b16 %v110
  %v452 = vunpack.c.h.b16 %v110
  %v453 = vunpack.c.l.b16 %v111
  %v454 = vunpack.c.h.b16 %v111
  %v455 = vunpack.c.l.b16 %v112
  %v456 = vunpack.c.h.b16 %v112
  %v457 = vunpack.c.l.b16 %v113
  %v458 = vunpack.c.h.b16 %v113
  %v459 = vunpack.c.l.b16 %v114
  %v460 = vunpack.c.h.b16 %v114
  %v461 = vunpack.c.l.b16 %v115
  %v462 = vunpack.c.h.b16 %v115
  %v463 = vunpack.c.l.b16 %v116
  %v464 = vunpack.c.h.b16 %v116
  %v465 = vunpack.c.l.b16 %v117
  %v466 = vunpack.c.h.b16 %v117
  %v467 = vunpack.c.l.b16 %v118
  %v468 = vunpack.c.h.b16 %v118
  %v469 = vunpack.c.l.b16 %v119
  %v470 = vunpack.c.h.b16 %v119
  %v471 = vunpack.c.l.b16 %v120
  %v472 = vunpack.c.h.b16 %v120
  %v473 = vunpack.c.l.b16 %v121
  %v474 = vunpack.c.h.b16 %v121
  %v475 = vunpack.c.l.b16 %v122
  %v476 = vunpack.c.h.b16 %v122
  %v477 = vunpack.c.l.b16 %v123
  %v478 = vunpack.c.h.b16 %v123
  %v479 = vunpack.c.l.b16 %v124
  %v480 = vunpack.c.h.b16 %v124
  %v481 = vunpack.c.l.b16 %v125
  %v482 = vunpack.c.h.b16 %v125
  %v483 = vunpack.c.l.b16 %v126
  %v484 = vunpack.c.h.b16 %v126
  %v485 = vunpack.c.l.b16 %v127
  %v486 = vunpack.c.h.b16 %v127
  %v487 = vunpack.c.l.b16 %v128
  %v488 = vunpack.c.h.b16 %v128
  %v489 = vunpack.c.l.b16 %v129
  %v490 = vunpack.c.h.b16 %v129
  %v491 = vunpack.c.l.b16 %v130
  %v492 = vunpack.c.h.b16 %v130
  %v493 = vunpack.c.l.b16 %v131
  %v494 = vunpack.c.h.b16 %v131
  %v495 = vunpack.c.l.b16 %v132
  %v496 = vunpack.c.h.b16 %v132
  %v497 = vunpack.c.l.b16 %v133
  %v498 = vunpack.c.h.b16 %v133
  %v499 = vunpack.c.l.b16 %v134
  %v500 = vunpack.c.h.b16 %v134
  %v501 = vunpack.c.l.b16 %v135
  %v502 = vunpack.c.h.b16 %v135
  %v503 = vunpack.c.l.b16 %v136
  %v504 = vunpack.c.h.b16 %v136
  %v505 = vunpack.c.l.b16 %v137
  %v506 = vunpack.c.h.b16 %v137
  %v507 = vunpack.c.l.b16 %v138
  %v508 = vunpack.c.h.b16 %v138
  %v509 = vunpack.c.l.b16 %v139
  %v510 = vunpack.c.h.b16 %v139
  %v511 = vunpack.c.l.b16 %v140
  %v512 = vunpack.c.h.b16 %v140
  %v513 = vunpack.c.l.b16 %v141
  %v514 = vunpack.c.h.b16 %v141
  %v515 = vunpack.c.l.b16 %v142
  %v516 = vunpack.c.h.b16 %v142
  %v517 = vunpack.c.l.b16 %v143
  %v518 = vunpack.c.h.b16 %v143
  %v519 = vunpack.c.l.b16 %v144
  %v520 = vunpack.c.h.b16 %v144
  %v521 = vunpack.c.l.b16 %v145
  %v522 = vunpack.c.h.b16 %v145
  %v523 = vunpack.c.l.b16 %v146
  %v524 = vunpack.c.h.b16 %v146
  %v525 = vunpack.c.l.b16 %v147
  %v526 = vunpack.c.h.b16 %v147
  %v527 = vunpack.c.l.b16 %v148
  %v528 = vunpack.c.h.b16 %v148
  %v529 = vunpack.c.l.b16 %v149
  %v530 = vunpack.c.h.b16 %v149
  %v531 = vunpack.c.l.b16 %v150
  %v532 = vunpack.c.h.b16 %v150
  %v533 = vunpack.c.l.b16 %v151
  %v534 = vunpack.c.h.b16 %v151
  %v535 = vunpack.c.l.b16 %v152
  %v536 = vunpack.c.h.b16 %v152
  %v537 = vunpack.c.l.b16 %v153
  %v538 = vunpack.c.h.b16 %v153
  %v539 = vunpack.c.l.b16 %v154
  %v540 = vunpack.c.h.b16 %v154
  %v541 = vunpack.c.l.b16 %v155
  %v542 = vunpack.c.h.b16 %v155
  %v543 = vunpack.c.l.b16 %v156
  %v544 = vunpack.c.h.b16 %v156
  %v545 = vunpack.c.l.b16 %v157
  %v546 = vunpack.c.h.b16 %v157
  %v547 = vunpack.c.l.b16 %v158
  %v548 = vunpack.c.h.b16 %v158
  %v549 = vunpack.c.l.b16 %v159
  %v550 = vunpack.c.h.b16 %v159
  %v551 = vunpack.c.l.b16 %v160
  %v552 = vunpack.c.h.b16 %v160
  %v553 = vunpack.c.l.b16 %v161
  %v554 = vunpack.c.h.b16 %v161
  %v555 = vunpack.c.l.b16 %v162
  %v556 = vunpack.c.h.b16 %v162
  %v557 = vunpack.c.l.b16 %v163
  %v558 = vunpack.c.h.b16 %v163
  %v559 = vunpack.c.l.b16 %v164
  %v560 = vunpack.c.h.b16 %v164
  %v561 = vunpack.c.l.b16 %v165
  %v562 = vunpack.c.h.b16 %v165
  %v563 = vunpack.c.l.b16 %v166
  %v564 = vunpack.c.h.b16 %v166
  %v565 = vunpack.c.l.b16 %v167
  %v566 = vunpack.c.h.b16 %v167
  %v567 = vunpack.c.l.b16 %v168
  %v568 = vunpack.c.h.b16 %v168
  %v569 = vunpack.c.l.b16 %v169
  %v570 = vunpack.c.h.b16 %v169
  %v571 = vunpack.c.l.b16 %v170
  %v572 = vunpack.c.h.b16 %v170
  %v573 = vunpack.c.l.b16 %v171
  %v574 = vunpack.c.h.b16 %v171
  %v575 = vunpack.c.l.b16 %v172
  %v576 = vunpack.c.h.b16 %v172
  %v577 = vunpack.c.l.b16 %v173
  %v578 = vunpack.c.h.b16 %v173
  %v579 = vunpack.c.l.b16 %v174
  %v580 = vunpack.c.h.b16 %v174
  %v581 = vunpack.c.l.b16 %v175
  %v582 = vunpack.c.h.b16 %v175
  %v583 = vunpack.c.l.b16 %v176
  %v584 = vunpack.c.h.b16 %v176
  %v585 = vunpack.c.l.b16 %v177
  %v586 = vunpack.c.h.b16 %v177
  %v587 = vunpack.c.l.b16 %v178
  %v588 = vunpack.c.h.b16 %v178
  %v589 = vunpack.c.l.b16 %v179
  %v590 = vunpack.c.h.b16 %v179
  %v591 = vunpack.c.l.b16 %v180
  %v592 = vunpack.c.h.b16 %v180
  %v593 = vunpack.c.l.b16 %v181
  %v594 = vunpack.c.h.b16 %v181
  %v595 = vunpack.c.l.b16 %v182
  %v596 = vunpack.c.h.b16 %v182
  %v597 = vunpack.c.l.b16 %v183
  %v598 = vunpack.c.h.b16 %v183
  %v599 = vunpack.c.l.b16 %v184
  %v600 = vunpack.c.h.b16 %v184
  %v601 = vunpack.c.l.b16 %v185
  %v602 = vunpack.c.h.b16 %v185
  %v603 = vunpack.c.l.b16 %v186
  %v604 = vunpack.c.h.b16 %v186
  %v605 = vunpack.c.l.b16 %v187
  %v606 = vunpack.c.h.b16 %v187
  %v607 = vunpack.c.l.b16 %v188
  %v608 = vunpack.c.h.b16 %v188
  %v609 = vunpack.c.l.b16 %v189
  %v610 = vunpack.c.h.b16 %v189
  %v611 = vunpack.c.l.b16 %v190
  %v612 = vunpack.c.h.b16 %v190
  %v613 = vunpack.c.l.b16 %v191
  %v614 = vunpack.c.h.b16 %v191
  %v615 = vunpack.c.l.b16 %v192
  %v616 = vunpack.c.h.b16 %v192
  %v617 = vunpack.c.l.b16 %v193
  %v618 = vunpack.c.h.b16 %v193
  %v619 = vunpack.c.l.b16 %v194
  %v620 = vunpack.c.h.b16 %v194
  %v621 = vunpack.c.l.b16 %v195
  %v622 = vunpack.c.h.b16 %v195
  %v623 = vunpack.c.l.b16 %v196
  %v624 = vunpack.c.h.b16 %v196
  %v625 = vunpack.c.l.b16 %v197
  %v626 = vunpack.c.h.b16 %v197
  %v627 = vunpack.c.l.b16 %v198
  %v628 = vunpack.c.h.b16 %v198
  %v629 = vunpack.c.l.b16 %v199
  %v630 = vunpack.c.h.b16 %v199
  %v631 = vunpack.c.l.b16 %v200
  %v632 = vunpack.c.h.b16 %v200
  %v633 = vunpack.c.l.b16 %v201
  %v634 = vunpack.c.h.b16 %v201
  %v635 = vunpack.c.l.b16 %v202
  %v636 = vunpack.c.h.b16 %v202
  %v637 = vunpack.c.l.b16 %v203
  %v638 = vunpack.c.h.b16 %v203
  %v639 = vunpack.c.l.b16 %v204
  %v640 = vunpack.c.h.b16 %v204
  %v641 = vunpack.c.l.b16 %v205
  %v642 = vunpack.c.h.b16 %v205
  %v643 = vunpack.c.l.b16 %v206
  %v644 = vunpack.c.h.b16 %v206
  %v645 = vunpack.c.l.b16 %v207
  %v646 = vunpack.c.h.b16 %v207
  %v647 = vunpack.c.l.b16 %v208
  %v648 = vunpack.c.h.b16 %v208
  %v649 = vunpack.c.l.b16 %v209
  %v650 = vunpack.c.h.b16 %v209
  %v651 = vunpack.c.l.b16 %v210
  %v652 = vunpack.c.h.b16 %v210
  %v653 = vunpack.c.l.b16 %v211
  %v654 = vunpack.c.h.b16 %v211
  %v655 = vunpack.c.l.b16 %v212
  %v656 = vunpack.c.h.b16 %v212
  %v657 = vunpack.c.l.b16 %v213
  %v658 = vunpack.c.h.b16 %v213
  %v659 = vunpack.c.l.b16 %v214
  %v660 = vunpack.c.h.b16 %v214
  %v661 = vunpack.c.l.b16 %v215
  %v662 = vunpack.c.h.b16 %v215
  %v663 = vunpack.c.l.b16 %v216
  %v664 = vunpack.c.h.b16 %v216
  %v665 = vunpack.c.l.b16 %v217
  %v666 = vunpack.c.h.b16 %v217
  %v667 = vpack.c.b16 %v385, %v379
  %v668 = vpack.c.b16 %v386, %v380
  %v669 = vpack.c.b16 %v387, %v381
  %v670 = vpack.c.b16 %v388, %v382
  %v671 = vpack.c.b16 %v389, %v383
  %v672 = vpack.c.b16 %v390, %v384
  %v673 = vpack.c.b16 %v397, %v391
  %v674 = vpack.c.b16 %v398, %v392
  %v675 = vpack.c.b16 %v399, %v393
  %v676 = vpack.c.b16 %v400, %v394
  %v677 = vpack.c.b16 %v401, %v395
  %v678 = vpack.c.b16 %v402, %v396
  %v679 = vpack.c.b16 %v409, %v403
  %v680 = vpack.c.b16 %v410, %v404
  %v681 = vpack.c.b16 %v411, %v405
  %v682 = vpack.c.b16 %v412, %v406
  %v683 = vpack.c.b16 %v413, %v407
  %v684 = vpack.c.b16 %v414, %v408
  %v685 = vpack.c.b16 %v421, %v415
  %v686 = vpack.c.b16 %v422, %v416
  %v687 = vpack.c.b16 %v423, %v417
  %v688 = vpack.c.b16 %v424, %v418
  %v689 = vpack.c.b16 %v425, %v419
  %v690 = vpack.c.b16 %v426, %v420
  %v691 = vpack.c.b16 %v433, %v427
  %v692 = vpack.c.b16 %v434, %v428
  %v693 = vpack.c.b16 %v435, %v429
  %v694 = vpack.c.b16 %v436, %v430
  %v695 = vpack.c.b16 %v437, %v431
  %v696 = vpack.c.b16 %v438, %v432
  %v697 = vpack.c.b16 %v445, %v439
  %v698 = vpack.c.b16 %v446, %v440
  %v699 = vpack.c.b16 %v447, %v441
  %v700 = vpack.c.b16 %v448, %v442
  %v701 = vpack.c.b16 %v449, %v443
  %v702 = vpack.c.b16 %v450, %v444
  %v703 = vpack.c.b16 %v457, %v451
  %v704 = vpack.c.b16 %v458, %v452
  %v705 = vpack.c.b16 %v459, %v453
  %v706 = vpack.c.b16 %v460, %v454
  %v707 = vpack.c.b16 %v461, %v455
  %v708 = vpack.c.b16 %v462, %v456
  %v709 = vpack.c.b16 %v469, %v463
  %v710 = vpack.c.b16 %v470, %v464
  %v711 = vpack.c.b16 %v471, %v465
  %v712 = vpack.c.b16 %v472, %v466
  %v713 = vpack.c.b16 %v473, %v467
  %v714 = vpack.c.b16 %v474, %v468
  %v715 = vpack.c.b16 %v481, %v475
  %v716 = vpack.c.b16 %v482, %v476
  %v717 = vpack.c.b16 %v483, %v477
  %v718 = vpack.c.b16 %v484, %v478
  %v719 = vpack.c.b16 %v485, %v479
  %v720 = vpack.c.b16 %v486, %v480
  %v721 = vpack.c.b16 %v493, %v487
  %v722 = vpack.c.b16 %v494, %v488
  %v723 = vpack.c.b16 %v495, %v489
  %v724 = vpack.c.b16 %v496, %v490
  %v725 = vpack.c.b16 %v497, %v491
  %v726 = vpack.c.b16 %v498, %v492
  %v727 = vpack.c.b16 %v505, %v499
  %v728 = vpack.c.b16 %v506, %v500
  %v729 = vpack.c.b16 %v507, %v501
  %v730 = vpack.c.b16 %v508, %v502
  %v731 = vpack.c.b16 %v509, %v503
  %v732 = vpack.c.b16 %v510, %v504
  %v733 = vpack.c.b16 %v517, %v511
  %v734 = vpack.c.b16 %v518, %v512
  %v735 = vpack.c.b16 %v519, %v513
  %v736 = vpack.c.b16 %v520, %v514
  %v737 = vpack.c.b16 %v521, %v515
  %v738 = vpack.c.b16 %v522, %v516
  %v739 = vpack.c.b16 %v529, %v523
  %v740 = vpack.c.b16 %v530, %v524
  %v741 = vpack.c.b16 %v531, %v525
  %v742 = vpack.c.b16 %v532, %v526
  %v743 = vpack.c.b16 %v533, %v527
  %v744 = vpack.c.b16 %v534, %v528
  %v745 = vpack.c.b16 %v541, %v535
  %v746 = vpack.c.b16 %v542, %v536
  %v747 = vpack.c.b16 %v543, %v537
  %v748 = vpack.c.b16 %v544, %v538
  %v749 = vpack.c.b16 %v545, %v539
  %v750 = vpack.c.b16 %v546, %v540
  %v751 = vpack.c.b16 %v553, %v547
  %v752 = vpack.c.b16 %v554, %v548
  %v753 = vpack.c.b16 %v555, %v549
  %v754 = vpack.c.b16 %v556, %v550
  %v755 = vpack.c.b16 %v557, %v551
  %v756 = vpack.c.b16 %v558, %v552
  %v757 = vpack.c.b16 %v565, %v559
  %v758 = vpack.c.b16 %v566, %v560
  %v759 = vpack.c.b16 %v567, %v561
  %v760 = vpack.c.b16 %v568, %v562
  %v761 = vpack.c.b16 %v569, %v563
  %v762 = vpack.c.b16 %v570, %v564
  %v763 = vpack.c.b16 %v577, %v571
  %v764 = vpack.c.b16 %v578, %v572
  %v765 = vpack.c.b16 %v579, %v573
  %v766 = vpack.c.b16 %v580, %v574
  %v767 = vpack.c.b16 %v581, %v575
  %v768 = vpack.c.b16 %v582, %v576
  %v769 = vpack.c.b16 %v589, %v583
  %v770 = vpack.c.b16 %v590, %v584
  %v771 = vpack.c.b16 %v591, %v585
  %v772 = vpack.c.b16 %v592, %v586
  %v773 = vpack.c.b16 %v593, %v587
  %v774 = vpack.c.b16 %v594, %v588
  %v775 = vpack.c.b16 %v601, %v595
  %v776 = vpack.c.b16 %v602, %v596
  %v777 = vpack.c.b16 %v603, %v597
  %v778 = vpack.c.b16 %v604, %v598
  %v779 = vpack.c.b16 %v605, %v599
  %v780 = vpack.c.b16 %v606, %v600
  %v781 = vpack.c.b16 %v613, %v607
  %v782 = vpack.c.b16 %v614, %v608
  %v783 = vpack.c.b16 %v615, %v609
  %v784 = vpack.c.b16 %v616, %v610
  %v785 = vpack.c.b16 %v617, %v611
  %v786 = vpack.c.b16 %v618, %v612
  %v787 = vpack.c.b16 %v625, %v619
  %v788 = vpack.c.b16 %v626, %v620
  %v789 = vpack.c.b16 %v627, %v621
  %v790 = vpack.c.b16 %v628, %v622
  %v791 = vpack.c.b16 %v629, %v623
  %v792 = vpack.c.b16 %v630, %v624
  %v793 = vpack.c.b16 %v637, %v631
  %v794 = vpack.c.b16 %v638, %v632
  %v795 = vpack.c.b16 %v639, %v633
  %v796 = vpack.c.b16 %v640, %v634
  %v797 = vpack.c.b16 %v641, %v635
  %v798 = vpack.c.b16 %v642, %v636
  %v799 = vpack.c.b16 %v649, %v643
  %v800 = vpack.c.b16 %v650, %v644
  %v801 = vpack.c.b16 %v651, %v645
  %v802 = vpack.c.b16 %v652, %v646
  %v803 = vpack.c.b16 %v653, %v647
  %v804 = vpack.c.b16 %v654, %v648
  %v805 = vpack.c.b16 %v661, %v655
  %v806 = vpack.c.b16 %v662, %v656
  %v807 = vpack.c.b16 %v663, %v657
  %v808 = vpack.c.b16 %v664, %v658
  %v809 = vpack.c.b16 %v665, %v659
  %v810 = vpack.c.b16 %v666, %v660
  %955 = vmatprep.subr.bf16.mxu0 %v710
  %956 = vmatpush1.bf16.xpose.msra.mxu0 %v709
  %957 = vmatprep.subr.bf16.mxu0 %v704
  %958 = vmatpush1.bf16.xpose.msra.mxu0 %v703
  %959 = vmatprep.subr.bf16.mxu0 %v698
  %960 = vmatpush1.bf16.xpose.msra.mxu0 %v697
  %961 = vmatprep.subr.bf16.mxu0 %v692
  %962 = vmatpush1.bf16.xpose.msra.mxu0 %v691
  %963 = vmatprep.subr.bf16.mxu0 %v686
  %964 = vmatpush1.bf16.xpose.msra.mxu0 %v685
  %965 = vmatprep.subr.bf16.mxu0 %v680
  %966 = vmatpush1.bf16.xpose.msra.mxu0 %v679
  %967 = vmatprep.subr.bf16.mxu0 %v674
  %968 = vmatpush1.bf16.xpose.msra.mxu0 %v673
  %969 = vmatprep.subr.bf16.mxu0 %v668
  %970 = vmatpush1.bf16.xpose.msra.mxu0 %v667
  %971 = vmatprep.subr.bf16.mxu0 %v758
  %972 = vmatpush2.bf16.xpose.msra.mxu0 %v757
  %973 = vmatprep.subr.bf16.mxu0 %v752
  %974 = vmatpush2.bf16.xpose.msra.mxu0 %v751
  %975 = vmatprep.subr.bf16.mxu0 %v746
  %976 = vmatpush2.bf16.xpose.msra.mxu0 %v745
  %977 = vmatprep.subr.bf16.mxu0 %v740
  %978 = vmatpush2.bf16.xpose.msra.mxu0 %v739
  %979 = vmatprep.subr.bf16.mxu0 %v734
  %980 = vmatpush2.bf16.xpose.msra.mxu0 %v733
  %981 = vmatprep.subr.bf16.mxu0 %v728
  %982 = vmatpush2.bf16.xpose.msra.mxu0 %v727
  %983 = vmatprep.subr.bf16.mxu0 %v722
  %984 = vmatpush2.bf16.xpose.msra.mxu0 %v721
  %985 = vmatprep.subr.bf16.mxu0 %v716
  %986 = vmatpush2.bf16.xpose.msra.mxu0 %v715
  %987 = vmatprep.mubr.bf16.mxu0 %v69
  %988 = vmatmul.mubr.bf16.gmra.mxu0 %v68
  %v989 = vpop.f32.mrf.mxu0
  %v990 = vadd.f32 %v223, %v989
  %v991 = vpop.f32.mrf.mxu0
  %v992 = vadd.f32 %v227, %v991
  %v993 = vpop.f32.mrf.mxu0
  %v994 = vpop.f32.mrf.mxu0
  %995 = vdwg.mxu0
  %996 = vmatprep.subr.bf16.mxu0 %v712
  %997 = vmatpush1.bf16.xpose.msra.mxu0 %v711
  %998 = vmatprep.subr.bf16.mxu0 %v706
  %999 = vmatpush1.bf16.xpose.msra.mxu0 %v705
  %1000 = vmatprep.subr.bf16.mxu0 %v700
  %1001 = vmatpush1.bf16.xpose.msra.mxu0 %v699
  %1002 = vmatprep.subr.bf16.mxu0 %v694
  %1003 = vmatpush1.bf16.xpose.msra.mxu0 %v693
  %1004 = vmatprep.subr.bf16.mxu0 %v688
  %1005 = vmatpush1.bf16.xpose.msra.mxu0 %v687
  %1006 = vmatprep.subr.bf16.mxu0 %v682
  %1007 = vmatpush1.bf16.xpose.msra.mxu0 %v681
  %1008 = vmatprep.subr.bf16.mxu0 %v676
  %1009 = vmatpush1.bf16.xpose.msra.mxu0 %v675
  %1010 = vmatprep.subr.bf16.mxu0 %v670
  %1011 = vmatpush1.bf16.xpose.msra.mxu0 %v669
  %1012 = vmatprep.subr.bf16.mxu0 %v760
  %1013 = vmatpush2.bf16.xpose.msra.mxu0 %v759
  %1014 = vmatprep.subr.bf16.mxu0 %v754
  %1015 = vmatpush2.bf16.xpose.msra.mxu0 %v753
  %1016 = vmatprep.subr.bf16.mxu0 %v748
  %1017 = vmatpush2.bf16.xpose.msra.mxu0 %v747
  %1018 = vmatprep.subr.bf16.mxu0 %v742
  %1019 = vmatpush2.bf16.xpose.msra.mxu0 %v741
  %1020 = vmatprep.subr.bf16.mxu0 %v736
  %1021 = vmatpush2.bf16.xpose.msra.mxu0 %v735
  %1022 = vmatprep.subr.bf16.mxu0 %v730
  %1023 = vmatpush2.bf16.xpose.msra.mxu0 %v729
  %1024 = vmatprep.subr.bf16.mxu0 %v724
  %1025 = vmatpush2.bf16.xpose.msra.mxu0 %v723
  %1026 = vmatprep.subr.bf16.mxu0 %v718
  %1027 = vmatpush2.bf16.xpose.msra.mxu0 %v717
  %1028 = vmatprep.mubr.bf16.mxu0 %v71
  %1029 = vmatmul.mubr.bf16.gmra.mxu0 %v70
  %v1030 = vpop.f32.mrf.mxu0
  %v1031 = vadd.f32 %v990, %v1030
  %v1032 = vpop.f32.mrf.mxu0
  %v1033 = vadd.f32 %v992, %v1032
  %v1034 = vpop.f32.mrf.mxu0
  %v1035 = vpop.f32.mrf.mxu0
  %1036 = vdwg.mxu0
  %1037 = vmatprep.subr.bf16.mxu0 %v714
  %1038 = vmatpush1.bf16.xpose.msra.mxu0 %v713
  %1039 = vmatprep.subr.bf16.mxu0 %v708
  %1040 = vmatpush1.bf16.xpose.msra.mxu0 %v707
  %1041 = vmatprep.subr.bf16.mxu0 %v702
  %1042 = vmatpush1.bf16.xpose.msra.mxu0 %v701
  %1043 = vmatprep.subr.bf16.mxu0 %v696
  %1044 = vmatpush1.bf16.xpose.msra.mxu0 %v695
  %1045 = vmatprep.subr.bf16.mxu0 %v690
  %1046 = vmatpush1.bf16.xpose.msra.mxu0 %v689
  %1047 = vmatprep.subr.bf16.mxu0 %v684
  %1048 = vmatpush1.bf16.xpose.msra.mxu0 %v683
  %1049 = vmatprep.subr.bf16.mxu0 %v678
  %1050 = vmatpush1.bf16.xpose.msra.mxu0 %v677
  %1051 = vmatprep.subr.bf16.mxu0 %v672
  %1052 = vmatpush1.bf16.xpose.msra.mxu0 %v671
  %1053 = vmatprep.subr.bf16.mxu0 %v762
  %1054 = vmatpush2.bf16.xpose.msra.mxu0 %v761
  %1055 = vmatprep.subr.bf16.mxu0 %v756
  %1056 = vmatpush2.bf16.xpose.msra.mxu0 %v755
  %1057 = vmatprep.subr.bf16.mxu0 %v750
  %1058 = vmatpush2.bf16.xpose.msra.mxu0 %v749
  %1059 = vmatprep.subr.bf16.mxu0 %v744
  %1060 = vmatpush2.bf16.xpose.msra.mxu0 %v743
  %1061 = vmatprep.subr.bf16.mxu0 %v738
  %1062 = vmatpush2.bf16.xpose.msra.mxu0 %v737
  %1063 = vmatprep.subr.bf16.mxu0 %v732
  %1064 = vmatpush2.bf16.xpose.msra.mxu0 %v731
  %1065 = vmatprep.subr.bf16.mxu0 %v726
  %1066 = vmatpush2.bf16.xpose.msra.mxu0 %v725
  %1067 = vmatprep.subr.bf16.mxu0 %v720
  %1068 = vmatpush2.bf16.xpose.msra.mxu0 %v719
  %1069 = vmatprep.mubr.bf16.mxu0 %v73
  %1070 = vmatmul.mubr.bf16.gmra.mxu0 %v72
  %v1071 = vpop.f32.mrf.mxu0
  %v1072 = vadd.f32 %v1031, %v1071
  %v1073 = vpop.f32.mrf.mxu0
  %v1074 = vadd.f32 %v1033, %v1073
  %v1075 = vpop.f32.mrf.mxu0
  %v1076 = vpop.f32.mrf.mxu0
  %1077 = vdwg.mxu0
  %1078 = vmatprep.subr.bf16.mxu0 %v806
  %1079 = vmatpush1.bf16.xpose.msra.mxu0 %v805
  %1080 = vmatprep.subr.bf16.mxu0 %v800
  %1081 = vmatpush1.bf16.xpose.msra.mxu0 %v799
  %1082 = vmatprep.subr.bf16.mxu0 %v794
  %1083 = vmatpush1.bf16.xpose.msra.mxu0 %v793
  %1084 = vmatprep.subr.bf16.mxu0 %v788
  %1085 = vmatpush1.bf16.xpose.msra.mxu0 %v787
  %1086 = vmatprep.subr.bf16.mxu0 %v782
  %1087 = vmatpush1.bf16.xpose.msra.mxu0 %v781
  %1088 = vmatprep.subr.bf16.mxu0 %v776
  %1089 = vmatpush1.bf16.xpose.msra.mxu0 %v775
  %1090 = vmatprep.subr.bf16.mxu0 %v770
  %1091 = vmatpush1.bf16.xpose.msra.mxu0 %v769
  %1092 = vmatprep.subr.bf16.mxu0 %v764
  %1093 = vmatpush1.bf16.xpose.msra.mxu0 %v763
  %1094 = vmatprep.subr.bf16.mxu0 0
  %1095 = vmatpush2.bf16.xpose.msra.mxu0 0
  %1096 = vmatprep.subr.bf16.mxu0 0
  %1097 = vmatpush2.bf16.xpose.msra.mxu0 0
  %1098 = vmatprep.subr.bf16.mxu0 0
  %1099 = vmatpush2.bf16.xpose.msra.mxu0 0
  %1100 = vmatprep.subr.bf16.mxu0 0
  %1101 = vmatpush2.bf16.xpose.msra.mxu0 0
  %1102 = vmatprep.subr.bf16.mxu0 0
  %1103 = vmatpush2.bf16.xpose.msra.mxu0 0
  %1104 = vmatprep.subr.bf16.mxu0 0
  %1105 = vmatpush2.bf16.xpose.msra.mxu0 0
  %1106 = vmatprep.subr.bf16.mxu0 0
  %1107 = vmatpush2.bf16.xpose.msra.mxu0 0
  %1108 = vmatprep.subr.bf16.mxu0 0
  %1109 = vmatpush2.bf16.xpose.msra.mxu0 0
  %1110 = vmatprep.mubr.bf16.mxu0 %v69
  %1111 = vmatmul.mubr.bf16.gmra.mxu0 %v68
  %v1112 = vpop.f32.mrf.mxu0
  %v1113 = vadd.f32 %v231, %v1112
  %v1114 = vpop.f32.mrf.mxu0
  %v1115 = vpop.f32.mrf.mxu0
  %v1116 = vpop.f32.mrf.mxu0
  %1117 = vdwg.mxu0
  %1118 = vmatprep.subr.bf16.mxu0 %v808
  %1119 = vmatpush1.bf16.xpose.msra.mxu0 %v807
  %1120 = vmatprep.subr.bf16.mxu0 %v802
  %1121 = vmatpush1.bf16.xpose.msra.mxu0 %v801
  %1122 = vmatprep.subr.bf16.mxu0 %v796
  %1123 = vmatpush1.bf16.xpose.msra.mxu0 %v795
  %1124 = vmatprep.subr.bf16.mxu0 %v790
  %1125 = vmatpush1.bf16.xpose.msra.mxu0 %v789
  %1126 = vmatprep.subr.bf16.mxu0 %v784
  %1127 = vmatpush1.bf16.xpose.msra.mxu0 %v783
  %1128 = vmatprep.subr.bf16.mxu0 %v778
  %1129 = vmatpush1.bf16.xpose.msra.mxu0 %v777
  %1130 = vmatprep.subr.bf16.mxu0 %v772
  %1131 = vmatpush1.bf16.xpose.msra.mxu0 %v771
  %1132 = vmatprep.subr.bf16.mxu0 %v766
  %1133 = vmatpush1.bf16.xpose.msra.mxu0 %v765
  %1134 = vmatprep.subr.bf16.mxu0 0
  %1135 = vmatpush2.bf16.xpose.msra.mxu0 0
  %1136 = vmatprep.subr.bf16.mxu0 0
  %1137 = vmatpush2.bf16.xpose.msra.mxu0 0
  %1138 = vmatprep.subr.bf16.mxu0 0
  %1139 = vmatpush2.bf16.xpose.msra.mxu0 0
  %1140 = vmatprep.subr.bf16.mxu0 0
  %1141 = vmatpush2.bf16.xpose.msra.mxu0 0
  %1142 = vmatprep.subr.bf16.mxu0 0
  %1143 = vmatpush2.bf16.xpose.msra.mxu0 0
  %1144 = vmatprep.subr.bf16.mxu0 0
  %1145 = vmatpush2.bf16.xpose.msra.mxu0 0
  %1146 = vmatprep.subr.bf16.mxu0 0
  %1147 = vmatpush2.bf16.xpose.msra.mxu0 0
  %1148 = vmatprep.subr.bf16.mxu0 0
  %1149 = vmatpush2.bf16.xpose.msra.mxu0 0
  %1150 = vmatprep.mubr.bf16.mxu0 %v71
  %1151 = vmatmul.mubr.bf16.gmra.mxu0 %v70
  %v1152 = vpop.f32.mrf.mxu0
  %v1153 = vadd.f32 %v1113, %v1152
  %v1154 = vpop.f32.mrf.mxu0
  %v1155 = vpop.f32.mrf.mxu0
  %v1156 = vpop.f32.mrf.mxu0
  %1157 = vdwg.mxu0
  %1158 = vmatprep.subr.bf16.mxu0 %v810
  %1159 = vmatpush1.bf16.xpose.msra.mxu0 %v809
  %1160 = vmatprep.subr.bf16.mxu0 %v804
  %1161 = vmatpush1.bf16.xpose.msra.mxu0 %v803
  %1162 = vmatprep.subr.bf16.mxu0 %v798
  %1163 = vmatpush1.bf16.xpose.msra.mxu0 %v797
  %1164 = vmatprep.subr.bf16.mxu0 %v792
  %1165 = vmatpush1.bf16.xpose.msra.mxu0 %v791
  %1166 = vmatprep.subr.bf16.mxu0 %v786
  %1167 = vmatpush1.bf16.xpose.msra.mxu0 %v785
  %1168 = vmatprep.subr.bf16.mxu0 %v780
  %1169 = vmatpush1.bf16.xpose.msra.mxu0 %v779
  %1170 = vmatprep.subr.bf16.mxu0 %v774
  %1171 = vmatpush1.bf16.xpose.msra.mxu0 %v773
  %1172 = vmatprep.subr.bf16.mxu0 %v768
  %1173 = vmatpush1.bf16.xpose.msra.mxu0 %v767
  %1174 = vmatprep.subr.bf16.mxu0 0
  %1175 = vmatpush2.bf16.xpose.msra.mxu0 0
  %1176 = vmatprep.subr.bf16.mxu0 0
  %1177 = vmatpush2.bf16.xpose.msra.mxu0 0
  %1178 = vmatprep.subr.bf16.mxu0 0
  %1179 = vmatpush2.bf16.xpose.msra.mxu0 0
  %1180 = vmatprep.subr.bf16.mxu0 0
  %1181 = vmatpush2.bf16.xpose.msra.mxu0 0
  %1182 = vmatprep.subr.bf16.mxu0 0
  %1183 = vmatpush2.bf16.xpose.msra.mxu0 0
  %1184 = vmatprep.subr.bf16.mxu0 0
  %1185 = vmatpush2.bf16.xpose.msra.mxu0 0
  %1186 = vmatprep.subr.bf16.mxu0 0
  %1187 = vmatpush2.bf16.xpose.msra.mxu0 0
  %1188 = vmatprep.subr.bf16.mxu0 0
  %1189 = vmatpush2.bf16.xpose.msra.mxu0 0
  %1190 = vmatprep.mubr.bf16.mxu0 %v73
  %1191 = vmatmul.mubr.bf16.gmra.mxu0 %v72
  %v1192 = vpop.f32.mrf.mxu0
  %v1193 = vadd.f32 %v1153, %v1192
  %v1194 = vpop.f32.mrf.mxu0
  %v1195 = vpop.f32.mrf.mxu0
  %v1196 = vpop.f32.mrf.mxu0
  %1197 = vdwg.mxu0
  %v1198 = vmax.f32 %v1072, %v1074
  %v1199 = vmax.f32 %v1198, %v1193
  %1200 = vmax.xlane.f32.xlu0 %v1199
  %v1201 = vpop.xlane.xlu0 %1200
  %v1202 = vsub.f32 %v1072, %v1201
  %v1203 = vsub.f32 %v1074, %v1201
  %v1204 = vsub.f32 %v1193, %v1201
  %v1205 = vmul.f32 %v1202, 1.442695
  %v1206 = vpow.pop %v1205
  %v1207 = vmul.f32 %v1203, 1.442695
  %v1208 = vpow.pop %v1207
  %v1209 = vmul.f32 %v1204, 1.442695
  %v1210 = vpow.pop %v1209
  %v1211 = vadd.f32 %v1206, %v1208
  %v1212 = vadd.f32 %v1211, %v1210
  %1213 = vadd.xlane.f32.xlu0 %v1212
  %v1214 = vpop.xlane.xlu0 %1213
  %v1215 = vlog2.pop %v1214
  %v1216 = vmul.f32 %v1215, 0.6931472
  %v1217 = vadd.f32 %v1201, %v1216
  %v1218 = vlaneseq
  %v1219 = vand.u32 %v1218, 127
  %v1220 = vadd.s32 %v1219, 128
  %v1221 = vadd.s32 %v1219, 256
  %v1222 = vld [vmem:[%s54] sm:$0xff]
  %1223 = vset.pattern.permute.xlu0 0
  %1224 = vperm.xlu0 %1223, %v1222
  %v1225 = vpop.permute.xlu0 %1224
  %vm1226 = vcmp.eq.s32.totalorder %v1219, %v1225
  %vm1227 = vcmp.eq.s32.totalorder %v1220, %v1225
  %vm1228 = vcmp.eq.s32.totalorder %v1221, %v1225
  %v1229 = vsel %vm1226, %v1072, 0.0
  %v1230 = vsel %vm1227, %v1074, 0.0
  %v1231 = vsel %vm1228, %v1193, 0.0
  %v1232 = vadd.f32 %v1229, %v1230
  %v1233 = vadd.f32 %v1232, %v1231
  %1234 = vadd.xlane.f32.xlu0 %v1233
  %v1235 = vpop.xlane.xlu0 %1234
  %s1236 = sadd.s32 0, 0
  %s1237 = smul.u32 %s1236, 8
  %v1238 = vlaneseq
  %v1239 = vshrl.u32 %v1238, 7
  %v1240 = vstv %s1237
  %v1241 = vadd.s32 %v1240, %v1239
  %s1242 = sld [smem:[#allocation3]]
  %v1243 = vstv %s1242
  %vm1244 = vcmp.lt.s32.totalorder %v1241, %v1243
  %v1245 = vsel %vm1244, 1, 0
  %v1246 = vcvt.s32.f32 %v1245
  %v1247 = vld [vmem:[%s5] sm:$0xff]
  %v1248 = vsub.f32 %v1217, %v1235
  %v1249 = vmul.f32 %v1248, %v1246
  %vm1250 = vcmask 7168
  %v1251 = vsel %vm1250, %v1249, 0.0
  %1252 = vadd.xlane.f32.xlu0 %v1251
  %v1253 = vpop.xlane.xlu0 %1252
  %v1254 = vrot.slane %v1253, 4
  %v1255 = vadd.f32 %v1253, %v1254
  %v1256 = vrot.slane %v1255, 2
  %v1257 = vadd.f32 %v1255, %v1256
  %v1258 = vrot.slane %v1257, 1
  %v1259 = vadd.f32 %v1257, %v1258
  %s1260 = vtos %v1259
  %v1261 = vstv %s1260
  %v1262 = vadd.f32 %v1247, %v1261
  %1263 = vst [vmem:[%s5] sm:$0xff] %v1262
  // Predicated region
  $region22: #{_forward_MLM.1} parent=0 // pred_check
    _
  $region23: #{_forward_MLM.1} parent=0 // pred_check_branch
    %1265 = sbr.rel (0) target = $region25
  $region24: #{_forward_MLM.1} parent=0 // pred_region
    _
  $region25: #{_forward_MLM.1} parent=0 // pred_fallthru
    _
  // Predicated region
  $region26: #{_forward_MLM.1} parent=0 // pred_check
    _
  $region27: #{_forward_MLM.1} parent=0 // pred_check_branch
    %1267 = sbr.rel (0) target = $region29
  $region28: #{_forward_MLM.1} parent=0 // pred_region
    _
  $region29: #{_forward_MLM.1} parent=0 // pred_fallthru
    _

</llo_original>
